<compile_context>
chip_gen: v7x
topology: tpu7x:2x2x1
jax: 0.10.0
libtpu: 0.0.40
codegen_flags: <defaults>
</compile_context>

<pallas_src>
from functools import partial

import jax
import jax.numpy as jnp
from jax.experimental import pallas as pl
from jax.experimental.pallas import tpu as pltpu


def _round_up(x: int, m: int) -> int:
    return ((x + m - 1) // m) * m


# --------------------------------------------------------------------------- #
# Kernel
# --------------------------------------------------------------------------- #
def _critic_kernel(s_ref, a_ref,
                   w1s_ref, w1a_ref, b1_ref,
                   w2_ref, b2_ref,
                   w3t_ref, b3t_ref,
                   qt_ref, *, split_l2, hp):
    """Fused twin-Q head for one batch tile; emits lane-dense transposed [2, TB]."""
    # Layer 1: split-input matmul replaces the wrapper-side concat.
    h1 = (jnp.dot(s_ref[...], w1s_ref[...], preferred_element_type=jnp.float32)
          + jnp.dot(a_ref[...], w1a_ref[...], preferred_element_type=jnp.float32)
          + b1_ref[...])
    h1 = jnp.maximum(h1, 0.0)                                   # ReLU (VPU)

    # Layer 2: either block-diagonal packed weights (small hidden) or two
    # lane-aligned per-head matmuls (hidden padded to a multiple of 128).
    if split_l2:
        h2a = jnp.dot(h1[:, :hp], w2_ref[0], preferred_element_type=jnp.float32)
        h2b = jnp.dot(h1[:, hp:], w2_ref[1], preferred_element_type=jnp.float32)
        h2 = jnp.concatenate([h2a, h2b], axis=1) + b2_ref[...]
    else:
        h2 = jnp.dot(h1, w2_ref[...], preferred_element_type=jnp.float32) + b2_ref[...]
    h2 = jnp.maximum(h2, 0.0)                                   # ReLU (VPU)

    # Layer 3, transposed: qt = w3t @ h2.T -> [2, TB]; row 0 = q1, row 1 = q2.
    qt = jax.lax.dot_general(w3t_ref[...], h2,
                             dimension_numbers=(((1,), (1,)), ((), ())),
                             preferred_element_type=jnp.float32)
    qt_ref[...] = (qt + b3t_ref[...]).astype(qt_ref.dtype)


# --------------------------------------------------------------------------- #
# Parameter init (PyTorch nn.Linear default) and head-fusing packing
# --------------------------------------------------------------------------- #
def init_critic_params(key, state_dim, action_dim, hidden_dim):
    """Per-head params, weights stored [in_features, out_features] (pre-transposed)."""
    in_dim = state_dim + action_dim

    def linear(k, fan_in, fan_out):
        kw, kb = jax.random.split(k)
        bound = 1.0 / jnp.sqrt(float(fan_in))
        w = jax.random.uniform(kw, (fan_in, fan_out), jnp.float32, -bound, bound)
        b = jax.random.uniform(kb, (1, fan_out), jnp.float32, -bound, bound)
        return w, b

    ks = jax.random.split(key, 6)
    w1a, b1a = linear(ks[0], in_dim, hidden_dim)
    w2a, b2a = linear(ks[1], hidden_dim, hidden_dim)
    w3a, b3a = linear(ks[2], hidden_dim, 1)
    w1b, b1b = linear(ks[3], in_dim, hidden_dim)
    w2b, b2b = linear(ks[4], hidden_dim, hidden_dim)
    w3b, b3b = linear(ks[5], hidden_dim, 1)
    return dict(w1a=w1a, b1a=b1a, w2a=w2a, b2a=b2a, w3a=w3a, b3a=b3a,
                w1b=w1b, b1b=b1b, w2b=w2b, b2b=b2b, w3b=w3b, b3b=b3b)


def pack_critic_params(p, state_dim, action_dim, hidden_dim):
    """Fuse the two heads into packed, lane-padded weights (done once, outside kernel)."""
    S, H = state_dim, hidden_dim
    if H <= 64:
        Hp = 64                     # 2*Hp == 128 lanes: block-diagonal layer 2 is fine
        split_l2 = False
    else:
        Hp = _round_up(H, 128)      # 128-lane boundary: per-head layer-2 matmuls
        split_l2 = True
    H2 = 2 * Hp

    def pad_cols(w, n):
        return jnp.pad(w, ((0, 0), (0, n - w.shape[1])))

    # Layer 1: split rows into state / action parts, concat heads column-wise.
    w1s = jnp.concatenate([pad_cols(p["w1a"][:S], Hp), pad_cols(p["w1b"][:S], Hp)], axis=1)
    w1a = jnp.concatenate([pad_cols(p["w1a"][S:], Hp), pad_cols(p["w1b"][S:], Hp)], axis=1)
    b1 = jnp.concatenate([pad_cols(p["b1a"], Hp), pad_cols(p["b1b"], Hp)], axis=1)

    # Layer 2. Zero padding is exact: padded hidden units are relu(0 + 0) = 0 and
    # feed zero rows everywhere downstream.
    def pad_sq(w):
        return jnp.pad(w, ((0, Hp - H), (0, Hp - H)))

    if split_l2:
        w2 = jnp.stack([pad_sq(p["w2a"]), pad_sq(p["w2b"])], axis=0)    # [2, Hp, Hp]
    else:
        w2 = jnp.zeros((H2, H2), jnp.float32)
        w2 = w2.at[:H, :H].set(p["w2a"])
        w2 = w2.at[Hp:Hp + H, Hp:Hp + H].set(p["w2b"])
    b2 = jnp.concatenate([pad_cols(p["b2a"], Hp), pad_cols(p["b2b"], Hp)], axis=1)

    # Layer 3, pre-transposed: [2, 2*Hp]; row 0 -> q1, row 1 -> q2.
    w3t = jnp.zeros((2, H2), jnp.float32)
    w3t = w3t.at[0, :H].set(p["w3a"][:, 0])
    w3t = w3t.at[1, Hp:Hp + H].set(p["w3b"][:, 0])
    b3t = jnp.concatenate([p["b3a"], p["b3b"]], axis=0)                 # [2, 1]

    return dict(w1s=w1s, w1a=w1a, b1=b1, w2=w2, b2=b2, w3t=w3t, b3t=b3t,
                hp=Hp, split_l2=split_l2)


# --------------------------------------------------------------------------- #
# Wrapper
# --------------------------------------------------------------------------- #
def critic_forward(state, action, packed, *, block_batch=4096):
    """Returns (q1, q2), each [B, 1] fp32."""
    B, S = state.shape
    A = action.shape[1]
    Hp = int(packed["hp"])
    H2 = 2 * Hp
    split_l2 = bool(packed["split_l2"])

    # ------------------ Batch-tile size from an explicit VMEM budget ----------
    # fp32 bytes per batch row resident in VMEM: double-buffered lane-padded
    # state/action blocks + transposed output column + h1/h2 intermediates
    # (with one extra H2-wide temp as compiler slack).
    Sl, Al = _round_up(S, 128), _round_up(A, 128)
    per_row = 4 * (2 * (Sl + Al) + 2 * 8 + 3 * H2)
    budget = 24 * 1024 * 1024                       # safe on v5e/v6e/v7x (64 MiB/TC)
    tb_cap = max(128, (budget // per_row) // 128 * 128)
    tb_limit = max(128, min(block_batch, tb_cap) // 128 * 128)

    # Single full-extent tile for small batches (no padding, no masking).
    # For larger batches use >=2 tiles (v7x second TensorCore gets work) with
    # TB a multiple of 128 so the transposed output blocks stay lane-dense;
    # the ragged last block is masked by Pallas (no jnp.pad copy of the inputs).
    two_tc_min = 2048
    if B <= min(tb_limit, two_tc_min):
        TB, grid = B, 1
    else:
        TB = min(tb_limit, max(128, _round_up(pl.cdiv(B, 2), 128)))
        grid = pl.cdiv(B, TB)

    weight_bytes = sum(int(packed[k].size) * 4
                       for k in ("w1s", "w1a", "b1", "w2", "b2", "w3t", "b3t"))
    vmem_est = TB * per_row + 2 * weight_bytes
    vmem_limit = int(min(max(2 * vmem_est, 32 * 1024 * 1024), 48 * 1024 * 1024))

    flops_l2 = 2 * Hp * Hp if split_l2 else H2 * H2
    cost = pl.CostEstimate(
        flops=2 * B * ((S + A) * H2 + flops_l2 + H2 * 2),
        transcendentals=0,
        bytes_accessed=B * (S + A + 2) * 4 + weight_bytes)

    def resident(arr):
        # Full-array block with a constant index map -> stays VMEM-resident.
        return pl.BlockSpec(arr.shape, lambda i, _nd=arr.ndim: (0,) * _nd)
    # TODO(synk): if the Mosaic dump shows these block-invariant weights being
    #             re-DMA'd per step, add pipeline_mode=pl.Buffered(1) to them.

    kernel = partial(_critic_kernel, split_l2=split_l2, hp=Hp)

    qt = pl.pallas_call(
        kernel,
        out_shape=jax.ShapeDtypeStruct((2, B), jnp.float32),
        grid=(grid,),
        in_specs=[
            pl.BlockSpec((TB, S), lambda i: (i, 0)),            # state tile
            pl.BlockSpec((TB, A), lambda i: (i, 0)),            # action tile
            resident(packed["w1s"]), resident(packed["w1a"]), resident(packed["b1"]),
            resident(packed["w2"]), resident(packed["b2"]),
            resident(packed["w3t"]), resident(packed["b3t"]),
        ],
        out_specs=pl.BlockSpec((2, TB), lambda i: (0, i)),      # lane-dense [q1 | q2].T
        compiler_params=pltpu.CompilerParams(
            dimension_semantics=("parallel",),                  # batch tiles -> both TCs on v7x
            vmem_limit_bytes=vmem_limit),
        cost_estimate=cost,
    )(state, action,
      packed["w1s"], packed["w1a"], packed["b1"],
      packed["w2"], packed["b2"], packed["w3t"], packed["b3t"])

    return qt[0, :, None], qt[1, :, None]


# --------------------------------------------------------------------------- #
# Pure-JAX reference (original unfused per-head math) for correctness check
# --------------------------------------------------------------------------- #
def _reference_forward(state, action, p):
    x = jnp.concatenate([state, action], axis=1)

    def head(w1, b1, w2, b2, w3, b3):
        h = jnp.maximum(x @ w1 + b1, 0.0)
        h = jnp.maximum(h @ w2 + b2, 0.0)
        return h @ w3 + b3

    return (head(p["w1a"], p["b1a"], p["w2a"], p["b2a"], p["w3a"], p["b3a"]),
            head(p["w1b"], p["b1b"], p["w2b"], p["b2b"], p["w3b"], p["b3b"]))


if __name__ == "__main__":
    key = jax.random.PRNGKey(0)
    kp, ks1, ka1, ks2, ka2, ks3, ka3, kp2, ks4, ka4 = jax.random.split(key, 10)

    # Small twin-Q critic (block-diagonal layer-2 path).
    S_DIM, A_DIM, HID = 12, 4, 32
    params = init_critic_params(kp, S_DIM, A_DIM, HID)
    packed = pack_critic_params(params, S_DIM, A_DIM, HID)

    # Case 1: tiny batch, single full-extent tile.
    s = jax.random.normal(ks1, (8, S_DIM), jnp.float32)
    a = jax.random.normal(ka1, (8, A_DIM), jnp.float32)
    q1, q2 = critic_forward(s, a, packed)
    jax.block_until_ready((q1, q2))
    r1, r2 = _reference_forward(s, a, params)
    assert q1.shape == (8, 1) and q2.shape == (8, 1)
    assert jnp.allclose(q1, r1, atol=1e-4), "q1 mismatch (B=8)"
    assert jnp.allclose(q2, r2, atol=1e-4), "q2 mismatch (B=8)"

    # Case 2: batch not a multiple of 8 (full-extent block, no padding copy).
    s = jax.random.normal(ks2, (37, S_DIM), jnp.float32)
    a = jax.random.normal(ka2, (37, A_DIM), jnp.float32)
    q1, q2 = critic_forward(s, a, packed)
    jax.block_until_ready((q1, q2))
    r1, r2 = _reference_forward(s, a, params)
    assert q1.shape == (37, 1) and q2.shape == (37, 1)
    assert jnp.allclose(q1, r1, atol=1e-4), "q1 mismatch (B=37)"
    assert jnp.allclose(q2, r2, atol=1e-4), "q2 mismatch (B=37)"

    # Case 3: multi-tile grid with a ragged last block (OOB masking, no pad copy).
    s = jax.random.normal(ks3, (300, S_DIM), jnp.float32)
    a = jax.random.normal(ka3, (300, A_DIM), jnp.float32)
    q1, q2 = critic_forward(s, a, packed, block_batch=128)
    jax.block_until_ready((q1, q2))
    r1, r2 = _reference_forward(s, a, params)
    assert q1.shape == (300, 1) and q2.shape == (300, 1)
    assert jnp.allclose(q1, r1, atol=1e-4), "q1 mismatch (B=300, ragged grid)"
    assert jnp.allclose(q2, r2, atol=1e-4), "q2 mismatch (B=300, ragged grid)"

    # Case 4: module-default hidden_dim=256 (lane-split layer-2 path).
    params2 = init_critic_params(kp2, S_DIM, A_DIM, 256)
    packed2 = pack_critic_params(params2, S_DIM, A_DIM, 256)
    s = jax.random.normal(ks4, (16, S_DIM), jnp.float32)
    a = jax.random.normal(ka4, (16, A_DIM), jnp.float32)
    q1, q2 = critic_forward(s, a, packed2)
    jax.block_until_ready((q1, q2))
    r1, r2 = _reference_forward(s, a, params2)
    assert jnp.allclose(q1, r1, atol=1e-4), "q1 mismatch (hidden=256)"
    assert jnp.allclose(q2, r2, atol=1e-4), "q2 mismatch (hidden=256)"

    print("KERNEL_OK")
</pallas_src>

<mosaic_0001>
module attributes {stable_mosaic.version = 11 : i64} {
  func.func @_critic_kernel(%arg0: i32, %arg1: memref<8x12xf32, #tpu.memory_space<vmem>>, %arg2: memref<8x4xf32, #tpu.memory_space<vmem>>, %arg3: memref<12x128xf32, #tpu.memory_space<vmem>>, %arg4: memref<4x128xf32, #tpu.memory_space<vmem>>, %arg5: memref<1x128xf32, #tpu.memory_space<vmem>>, %arg6: memref<128x128xf32, #tpu.memory_space<vmem>>, %arg7: memref<1x128xf32, #tpu.memory_space<vmem>>, %arg8: memref<2x128xf32, #tpu.memory_space<vmem>>, %arg9: memref<2x1xf32, #tpu.memory_space<vmem>>, %arg10: memref<2x8xf32, #tpu.memory_space<vmem>>) attributes {dimension_semantics = [#tpu.dimension_semantics<parallel>], iteration_bounds = array<i64: 1>, scalar_prefetch = 0 : i64, scratch_operands = 0 : i64, tpu.core_type = #tpu.core_type<tc>, window_params = [{transform_indices = @transform_0, window_bounds = array<i64: 8, 12>}, {transform_indices = @transform_1, window_bounds = array<i64: 8, 4>}, {pipeline_mode = #tpu.pipeline_mode<synchronous>, transform_indices = @transform_2, window_bounds = array<i64: 12, 128>}, {pipeline_mode = #tpu.pipeline_mode<synchronous>, transform_indices = @transform_3, window_bounds = array<i64: 4, 128>}, {pipeline_mode = #tpu.pipeline_mode<synchronous>, transform_indices = @transform_4, window_bounds = array<i64: 1, 128>}, {pipeline_mode = #tpu.pipeline_mode<synchronous>, transform_indices = @transform_5, window_bounds = array<i64: 128, 128>}, {pipeline_mode = #tpu.pipeline_mode<synchronous>, transform_indices = @transform_6, window_bounds = array<i64: 1, 128>}, {pipeline_mode = #tpu.pipeline_mode<synchronous>, transform_indices = @transform_7, window_bounds = array<i64: 2, 128>}, {pipeline_mode = #tpu.pipeline_mode<synchronous>, transform_indices = @transform_8, window_bounds = array<i64: 2, 1>}, {transform_indices = @transform_9, window_bounds = array<i64: 2, 8>}]} {
    %c0 = arith.constant 0 : index
    %c0_0 = arith.constant 0 : index
    %0 = vector.load %arg1[%c0, %c0_0] : memref<8x12xf32, #tpu.memory_space<vmem>>, vector<8x12xf32>
    %c0_1 = arith.constant 0 : index
    %c0_2 = arith.constant 0 : index
    %1 = vector.load %arg3[%c0_1, %c0_2] : memref<12x128xf32, #tpu.memory_space<vmem>>, vector<12x128xf32>
    %cst = arith.constant dense<0.000000e+00> : vector<8x128xf32>
    %2 = tpu.matmul %0, %1, %cst {dimension_numbers = #tpu.dot_dimension_numbers<[1], [0], [0], [1], [0, 0, 1, 1], [], []>} : vector<8x12xf32>, vector<12x128xf32>, vector<8x128xf32> -> vector<8x128xf32>
    %c0_3 = arith.constant 0 : index
    %c0_4 = arith.constant 0 : index
    %3 = vector.load %arg2[%c0_3, %c0_4] : memref<8x4xf32, #tpu.memory_space<vmem>>, vector<8x4xf32>
    %c0_5 = arith.constant 0 : index
    %c0_6 = arith.constant 0 : index
    %4 = vector.load %arg4[%c0_5, %c0_6] : memref<4x128xf32, #tpu.memory_space<vmem>>, vector<4x128xf32>
    %cst_7 = arith.constant dense<0.000000e+00> : vector<8x128xf32>
    %5 = tpu.matmul %3, %4, %cst_7 {dimension_numbers = #tpu.dot_dimension_numbers<[1], [0], [0], [1], [0, 0, 1, 1], [], []>} : vector<8x4xf32>, vector<4x128xf32>, vector<8x128xf32> -> vector<8x128xf32>
    %6 = arith.addf %2, %5 : vector<8x128xf32>
    %c0_8 = arith.constant 0 : index
    %c0_9 = arith.constant 0 : index
    %7 = vector.load %arg5[%c0_8, %c0_9] : memref<1x128xf32, #tpu.memory_space<vmem>>, vector<1x128xf32>
    %8 = vector.broadcast %7 : vector<1x128xf32> to vector<8x128xf32>
    %9 = arith.addf %6, %8 : vector<8x128xf32>
    %cst_10 = arith.constant 0.000000e+00 : f32
    %10 = vector.broadcast %cst_10 : f32 to vector<8x128xf32>
    %11 = arith.maximumf %9, %10 : vector<8x128xf32>
    %c0_11 = arith.constant 0 : index
    %c0_12 = arith.constant 0 : index
    %12 = vector.load %arg6[%c0_11, %c0_12] : memref<128x128xf32, #tpu.memory_space<vmem>>, vector<128x128xf32>
    %cst_13 = arith.constant dense<0.000000e+00> : vector<8x128xf32>
    %13 = tpu.matmul %11, %12, %cst_13 {dimension_numbers = #tpu.dot_dimension_numbers<[1], [0], [0], [1], [0, 0, 1, 1], [], []>} : vector<8x128xf32>, vector<128x128xf32>, vector<8x128xf32> -> vector<8x128xf32>
    %c0_14 = arith.constant 0 : index
    %c0_15 = arith.constant 0 : index
    %14 = vector.load %arg7[%c0_14, %c0_15] : memref<1x128xf32, #tpu.memory_space<vmem>>, vector<1x128xf32>
    %15 = vector.broadcast %14 : vector<1x128xf32> to vector<8x128xf32>
    %16 = arith.addf %13, %15 : vector<8x128xf32>
    %cst_16 = arith.constant 0.000000e+00 : f32
    %17 = vector.broadcast %cst_16 : f32 to vector<8x128xf32>
    %18 = arith.maximumf %16, %17 : vector<8x128xf32>
    %c0_17 = arith.constant 0 : index
    %c0_18 = arith.constant 0 : index
    %19 = vector.load %arg8[%c0_17, %c0_18] : memref<2x128xf32, #tpu.memory_space<vmem>>, vector<2x128xf32>
    %cst_19 = arith.constant dense<0.000000e+00> : vector<2x8xf32>
    %20 = tpu.matmul %19, %18, %cst_19 {dimension_numbers = #tpu.dot_dimension_numbers<[1], [1], [0], [0], [0, 0, 1, 0], [], []>} : vector<2x128xf32>, vector<8x128xf32>, vector<2x8xf32> -> vector<2x8xf32>
    %c0_20 = arith.constant 0 : index
    %c0_21 = arith.constant 0 : index
    %21 = vector.load %arg9[%c0_20, %c0_21] : memref<2x1xf32, #tpu.memory_space<vmem>>, vector<2x1xf32>
    %22 = vector.broadcast %21 : vector<2x1xf32> to vector<2x8xf32>
    %23 = arith.addf %20, %22 : vector<2x8xf32>
    %c0_22 = arith.constant 0 : index
    %c0_23 = arith.constant 0 : index
    %24 = vector.load %arg10[%c0_22, %c0_23] : memref<2x8xf32, #tpu.memory_space<vmem>>, vector<2x8xf32>
    tpu.vector_store %arg10[%c0_22, %c0_23], %23 {strides = array<i32>} : memref<2x8xf32, #tpu.memory_space<vmem>>, vector<2x8xf32>,
    return
  }
  func.func @transform_0(%arg0: i32) -> (i32, i32) {
    %c0_i32 = arith.constant 0 : i32
    %c0_i32_0 = arith.constant 0 : i32
    return %arg0, %c0_i32 : i32, i32
  }
  func.func @transform_1(%arg0: i32) -> (i32, i32) {
    %c0_i32 = arith.constant 0 : i32
    %c0_i32_0 = arith.constant 0 : i32
    return %arg0, %c0_i32 : i32, i32
  }
  func.func @transform_2(%arg0: i32) -> (i32, i32) {
    %c0_i32 = arith.constant 0 : i32
    %c0_i32_0 = arith.constant 0 : i32
    %c0_i32_1 = arith.constant 0 : i32
    return %c0_i32, %c0_i32_0 : i32, i32
  }
  func.func @transform_3(%arg0: i32) -> (i32, i32) {
    %c0_i32 = arith.constant 0 : i32
    %c0_i32_0 = arith.constant 0 : i32
    %c0_i32_1 = arith.constant 0 : i32
    return %c0_i32, %c0_i32_0 : i32, i32
  }
  func.func @transform_4(%arg0: i32) -> (i32, i32) {
    %c0_i32 = arith.constant 0 : i32
    %c0_i32_0 = arith.constant 0 : i32
    %c0_i32_1 = arith.constant 0 : i32
    return %c0_i32, %c0_i32_0 : i32, i32
  }
  func.func @transform_5(%arg0: i32) -> (i32, i32) {
    %c0_i32 = arith.constant 0 : i32
    %c0_i32_0 = arith.constant 0 : i32
    %c0_i32_1 = arith.constant 0 : i32
    return %c0_i32, %c0_i32_0 : i32, i32
  }
  func.func @transform_6(%arg0: i32) -> (i32, i32) {
    %c0_i32 = arith.constant 0 : i32
    %c0_i32_0 = arith.constant 0 : i32
    %c0_i32_1 = arith.constant 0 : i32
    return %c0_i32, %c0_i32_0 : i32, i32
  }
  func.func @transform_7(%arg0: i32) -> (i32, i32) {
    %c0_i32 = arith.constant 0 : i32
    %c0_i32_0 = arith.constant 0 : i32
    %c0_i32_1 = arith.constant 0 : i32
    return %c0_i32, %c0_i32_0 : i32, i32
  }
  func.func @transform_8(%arg0: i32) -> (i32, i32) {
    %c0_i32 = arith.constant 0 : i32
    %c0_i32_0 = arith.constant 0 : i32
    %c0_i32_1 = arith.constant 0 : i32
    return %c0_i32, %c0_i32_0 : i32, i32
  }
  func.func @transform_9(%arg0: i32) -> (i32, i32) {
    %c0_i32 = arith.constant 0 : i32
    %c0_i32_0 = arith.constant 0 : i32
    return %c0_i32, %arg0 : i32, i32
  }
}

</mosaic_0001>

<llo_original>
// kernel: tpu_custom_call.1
$region0: #{tpu_custom_call.1}
  #allocation0 [shape = 'u32[]', space=smem, size = 0x4, offset = 0x4, fixed_abs, tag = 'smem constant byte address 0x4 - core index']
  #allocation1 [shape = 'u32[144,128]{1,0:T(1,128)}', space=vmem, size = 0x12000, scoped, tag = 'internal scratch']
  %s0 = inlined_call_operand.hbm [shape: f32[8,12], index: 0, kind: input, shape index: {}]
  %s1 = inlined_call_operand.vmem [shape: f32[8,4], index: 1, kind: input, shape index: {}]
  %s2 = inlined_call_operand.vmem [shape: f32[12,128], index: 2, kind: input, shape index: {}]
  %s3 = inlined_call_operand.vmem [shape: f32[4,128], index: 3, kind: input, shape index: {}]
  %s4 = inlined_call_operand.vmem [shape: f32[1,128], index: 4, kind: input, shape index: {}]
  %s5 = inlined_call_operand.hbm [shape: f32[128,128], index: 5, kind: input, shape index: {}]
  %s6 = inlined_call_operand.vmem [shape: f32[1,128], index: 6, kind: input, shape index: {}]
  %s7 = inlined_call_operand.vmem [shape: f32[2,128], index: 7, kind: input, shape index: {}]
  %s8 = inlined_call_operand.vmem [shape: f32[2,1], index: 8, kind: input, shape index: {}]
  %s9 = inlined_call_operand.hbm [shape: f32[2,8], index: 9, kind: output, shape index: {}]
  %s10 = sld [smem:[#allocation0]]
  $region54: #{tpu_custom_call.1} parent=0
    _
  %s12 = ssub.s32 1, %s10
  %s13 = scalar_select 0, %s12, %s10
  $region1: #{tpu_custom_call.1} parent=0
    #allocation2 [shape = 'u8[4096]{0}', space=vmem, size = 0x1000, scoped, tag = 'input window, operand 0, single buffered']
    #allocation3 [shape = 's32[1]{0}', space=sflag, size = 0x4, scoped, tag = 'scoped memory for tpu_custom_call.1']
    #allocation4 [shape = 's32[1]{0}', space=sflag, size = 0x4, scoped, tag = 'scoped memory for tpu_custom_call.1']
    #allocation5 [shape = 'u8[65536]{0}', space=vmem, size = 0x10000, scoped, tag = 'input window, operand 5, single buffered']
    #allocation6 [shape = 's32[1]{0}', space=sflag, size = 0x4, scoped, tag = 'scoped memory for tpu_custom_call.1']
    #allocation7 [shape = 'u8[1024]{0}', space=vmem, size = 0x400, scoped, tag = 'output window, operand 0, single buffered']
    %14 = vsyncpa [#allocation3], 0
    %15 = vsyncpa [#allocation6], 0
    %16 = vsyncpa [#allocation4], 0
    // Predicated region
    $region2: #{tpu_custom_call.1} parent=1 // pred_check
      _
    $region3: #{tpu_custom_call.1} parent=1 // pred_check_branch
      %18 = sbr.rel (0) target = $region5
    $region4: #{tpu_custom_call.1} parent=1 // pred_region
      %s20 = ssub.s32 128, 128
      %21 = vsyncadd [#allocation3], %s20
      %s23 = sshll.u32 [#allocation2], 4
      %s24 = int_to_ptr.vmem [resolvable:$true] %s23
      %26 = dma.hbm_to_vmem [thread:$0]  %s0, 128, %s24, [#allocation3]
    $region5: #{tpu_custom_call.1} parent=1 // pred_fallthru
      _
    // Predicated region
    $region6: #{tpu_custom_call.1} parent=1 // pred_check
      _
    $region7: #{tpu_custom_call.1} parent=1 // pred_check_branch
      %28 = sbr.rel (0) target = $region9
    $region8: #{tpu_custom_call.1} parent=1 // pred_region
      _
    $region9: #{tpu_custom_call.1} parent=1 // pred_fallthru
      _
    // Predicated region
    $region10: #{tpu_custom_call.1} parent=1 // pred_check
      _
    $region11: #{tpu_custom_call.1} parent=1 // pred_check_branch
      %30 = sbr.rel (0) target = $region13
    $region12: #{tpu_custom_call.1} parent=1 // pred_region
      _
    $region13: #{tpu_custom_call.1} parent=1 // pred_fallthru
      _
    // Predicated region
    $region14: #{tpu_custom_call.1} parent=1 // pred_check
      _
    $region15: #{tpu_custom_call.1} parent=1 // pred_check_branch
      %32 = sbr.rel (0) target = $region17
    $region16: #{tpu_custom_call.1} parent=1 // pred_region
      _
    $region17: #{tpu_custom_call.1} parent=1 // pred_fallthru
      _
    // Predicated region
    $region18: #{tpu_custom_call.1} parent=1 // pred_check
      _
    $region19: #{tpu_custom_call.1} parent=1 // pred_check_branch
      %34 = sbr.rel (0) target = $region21
    $region20: #{tpu_custom_call.1} parent=1 // pred_region
      _
    $region21: #{tpu_custom_call.1} parent=1 // pred_fallthru
      _
    // Predicated region
    $region22: #{tpu_custom_call.1} parent=1 // pred_check
      _
    $region23: #{tpu_custom_call.1} parent=1 // pred_check_branch
      %36 = sbr.rel (0) target = $region25
    $region24: #{tpu_custom_call.1} parent=1 // pred_region
      %s38 = ssub.s32 2048, 2048
      %39 = vsyncadd [#allocation6], %s38
      %s40 = sshll.u32 [#allocation5], 4
      %s41 = int_to_ptr.vmem [resolvable:$true] %s40
      %46 = dma.hbm_to_vmem [thread:$0]  %s5, 2048, %s41, [#allocation6], 128, 128, 8
    $region25: #{tpu_custom_call.1} parent=1 // pred_fallthru
      _
    // Predicated region
    $region26: #{tpu_custom_call.1} parent=1 // pred_check
      _
    $region27: #{tpu_custom_call.1} parent=1 // pred_check_branch
      %48 = sbr.rel (0) target = $region29
    $region28: #{tpu_custom_call.1} parent=1 // pred_region
      _
    $region29: #{tpu_custom_call.1} parent=1 // pred_fallthru
      _
    // Predicated region
    $region30: #{tpu_custom_call.1} parent=1 // pred_check
      _
    $region31: #{tpu_custom_call.1} parent=1 // pred_check_branch
      %50 = sbr.rel (0) target = $region33
    $region32: #{tpu_custom_call.1} parent=1 // pred_region
      _
    $region33: #{tpu_custom_call.1} parent=1 // pred_fallthru
      _
    // Predicated region
    $region34: #{tpu_custom_call.1} parent=1 // pred_check
      _
    $region35: #{tpu_custom_call.1} parent=1 // pred_check_branch
      %52 = sbr.rel (0) target = $region37
    $region36: #{tpu_custom_call.1} parent=1 // pred_region
      _
    $region37: #{tpu_custom_call.1} parent=1 // pred_fallthru
      _
    // Predicated region
    $region38: #{tpu_custom_call.1} parent=1 // pred_check
      _
    $region39: #{tpu_custom_call.1} parent=1 // pred_check_branch
      %54 = sbr.rel (0) target = $region41
    $region40: #{tpu_custom_call.1} parent=1 // pred_region
      %55 = dma.done [#allocation3], 128
    $region41: #{tpu_custom_call.1} parent=1 // pred_fallthru
      _
    // Predicated region
    $region42: #{tpu_custom_call.1} parent=1 // pred_check
      _
    $region43: #{tpu_custom_call.1} parent=1 // pred_check_branch
      %57 = sbr.rel (0) target = $region45
    $region44: #{tpu_custom_call.1} parent=1 // pred_region
      %58 = dma.done [#allocation6], 2048
    $region45: #{tpu_custom_call.1} parent=1 // pred_fallthru
      _
    %v59 = vld [vmem:[#allocation2] sm:$0xff]
    %v60 = vld [vmem:[%s2] sm:$0xff]
    %v61 = vld [vmem:[%s2 + $0x8] sm:$0xf]
    %v62 = vld [vmem:[%s1] sm:$0xff]
    %v63 = vld [vmem:[%s3] sm:$0xf]
    %vm64 = vcmask 31744
    %v66 = vsel %vm64, %v62, 0
    %vm68 = vcmask 1043456
    %v70 = vsel %vm68, %v63, 0
    %72 = vmatprep.subr.mxu0 0.0
    %73 = vmatpush1.msra.mxu0 %v70
    %74 = vmatprep.subr.mxu0 0.0
    %75 = vmatpush1.msra.mxu0 0.0
    %76 = vmatprep.subr.mxu0 0.0
    %77 = vmatpush1.msra.mxu0 0.0
    %78 = vmatprep.subr.mxu0 0.0
    %79 = vmatpush1.msra.mxu0 0.0
    %80 = vmatprep.subr.mxu0 0.0
    %81 = vmatpush1.msra.mxu0 0.0
    %82 = vmatprep.subr.mxu0 0.0
    %83 = vmatpush1.msra.mxu0 0.0
    %84 = vmatprep.subr.mxu0 0.0
    %85 = vmatpush1.msra.mxu0 0.0
    %86 = vmatprep.subr.mxu0 0.0
    %87 = vmatpush1.msra.mxu0 0.0
    %88 = vmatprep.subr.mxu0 0.0
    %89 = vmatpush1.msra.mxu0 0.0
    %90 = vmatprep.subr.mxu0 0.0
    %91 = vmatpush1.msra.mxu0 0.0
    %92 = vmatprep.subr.mxu0 0.0
    %93 = vmatpush1.msra.mxu0 0.0
    %94 = vmatprep.subr.mxu0 0.0
    %95 = vmatpush1.msra.mxu0 0.0
    %96 = vmatprep.subr.mxu0 0.0
    %97 = vmatpush1.msra.mxu0 0.0
    %98 = vmatprep.subr.mxu0 0.0
    %99 = vmatpush1.msra.mxu0 0.0
    %100 = vmatprep.subr.mxu0 0.0
    %101 = vmatpush1.msra.mxu0 0.0
    %102 = vmatprep.subr.mxu0 0.0
    %103 = vmatpush1.msra.mxu0 0.0
    %104 = vmatprep.subr.mxu0 0.0
    %105 = vmatpush1.msra.mxu0 0.0
    %106 = vmatprep.subr.mxu0 0.0
    %107 = vmatpush1.msra.mxu0 0.0
    %108 = vmatprep.subr.mxu0 0.0
    %109 = vmatpush1.msra.mxu0 0.0
    %110 = vmatprep.subr.mxu0 0.0
    %111 = vmatpush1.msra.mxu0 0.0
    %112 = vmatprep.subr.mxu0 0.0
    %113 = vmatpush1.msra.mxu0 0.0
    %114 = vmatprep.subr.mxu0 0.0
    %115 = vmatpush1.msra.mxu0 0.0
    %116 = vmatprep.subr.mxu0 0.0
    %117 = vmatpush1.msra.mxu0 0.0
    %118 = vmatprep.subr.mxu0 0.0
    %119 = vmatpush1.msra.mxu0 0.0
    %120 = vmatprep.subr.mxu0 0.0
    %121 = vmatpush1.msra.mxu0 0.0
    %122 = vmatprep.subr.mxu0 0.0
    %123 = vmatpush1.msra.mxu0 0.0
    %124 = vmatprep.subr.mxu0 0.0
    %125 = vmatpush1.msra.mxu0 0.0
    %126 = vmatprep.subr.mxu0 0.0
    %127 = vmatpush1.msra.mxu0 0.0
    %128 = vmatprep.subr.mxu0 0.0
    %129 = vmatpush1.msra.mxu0 0.0
    %130 = vmatprep.subr.mxu0 0.0
    %131 = vmatpush1.msra.mxu0 0.0
    %132 = vmatprep.subr.mxu0 0.0
    %133 = vmatpush1.msra.mxu0 0.0
    %134 = vmatprep.subr.mxu0 0.0
    %135 = vmatpush1.msra.mxu0 0.0
    %136 = vmatprep.mubr.f32.mxu0 0.0
    %137 = vmatmul.mubr.f32.gmra.mrb[0].mxu0 %v66
    %v138 = vpop.f32.mrb[0].mxu0
    %v139 = vadd.f32 0.0, %v138
    %v140 = vpop.f32.mrb[0].mxu0
    %141 = vdwg.mxu0
    %vm142 = vcmask 97280
    %v144 = vsel %vm142, %v59, 0
    %v147 = vsel %vm68, %v61, 0
    %149 = vmatprep.subr.mxu0 0.0
    %150 = vmatpush1.msra.mxu0 %v60
    %151 = vmatprep.subr.mxu0 0.0
    %152 = vmatpush1.msra.mxu0 %v147
    %153 = vmatprep.subr.mxu0 0.0
    %154 = vmatpush1.msra.mxu0 0.0
    %155 = vmatprep.subr.mxu0 0.0
    %156 = vmatpush1.msra.mxu0 0.0
    %157 = vmatprep.subr.mxu0 0.0
    %158 = vmatpush1.msra.mxu0 0.0
    %159 = vmatprep.subr.mxu0 0.0
    %160 = vmatpush1.msra.mxu0 0.0
    %161 = vmatprep.subr.mxu0 0.0
    %162 = vmatpush1.msra.mxu0 0.0
    %163 = vmatprep.subr.mxu0 0.0
    %164 = vmatpush1.msra.mxu0 0.0
    %165 = vmatprep.subr.mxu0 0.0
    %166 = vmatpush1.msra.mxu0 0.0
    %167 = vmatprep.subr.mxu0 0.0
    %168 = vmatpush1.msra.mxu0 0.0
    %169 = vmatprep.subr.mxu0 0.0
    %170 = vmatpush1.msra.mxu0 0.0
    %171 = vmatprep.subr.mxu0 0.0
    %172 = vmatpush1.msra.mxu0 0.0
    %173 = vmatprep.subr.mxu0 0.0
    %174 = vmatpush1.msra.mxu0 0.0
    %175 = vmatprep.subr.mxu0 0.0
    %176 = vmatpush1.msra.mxu0 0.0
    %177 = vmatprep.subr.mxu0 0.0
    %178 = vmatpush1.msra.mxu0 0.0
    %179 = vmatprep.subr.mxu0 0.0
    %180 = vmatpush1.msra.mxu0 0.0
    %181 = vmatprep.subr.mxu0 0.0
    %182 = vmatpush1.msra.mxu0 0.0
    %183 = vmatprep.subr.mxu0 0.0
    %184 = vmatpush1.msra.mxu0 0.0
    %185 = vmatprep.subr.mxu0 0.0
    %186 = vmatpush1.msra.mxu0 0.0
    %187 = vmatprep.subr.mxu0 0.0
    %188 = vmatpush1.msra.mxu0 0.0
    %189 = vmatprep.subr.mxu0 0.0
    %190 = vmatpush1.msra.mxu0 0.0
    %191 = vmatprep.subr.mxu0 0.0
    %192 = vmatpush1.msra.mxu0 0.0
    %193 = vmatprep.subr.mxu0 0.0
    %194 = vmatpush1.msra.mxu0 0.0
    %195 = vmatprep.subr.mxu0 0.0
    %196 = vmatpush1.msra.mxu0 0.0
    %197 = vmatprep.subr.mxu0 0.0
    %198 = vmatpush1.msra.mxu0 0.0
    %199 = vmatprep.subr.mxu0 0.0
    %200 = vmatpush1.msra.mxu0 0.0
    %201 = vmatprep.subr.mxu0 0.0
    %202 = vmatpush1.msra.mxu0 0.0
    %203 = vmatprep.subr.mxu0 0.0
    %204 = vmatpush1.msra.mxu0 0.0
    %205 = vmatprep.subr.mxu0 0.0
    %206 = vmatpush1.msra.mxu0 0.0
    %207 = vmatprep.subr.mxu0 0.0
    %208 = vmatpush1.msra.mxu0 0.0
    %209 = vmatprep.subr.mxu0 0.0
    %210 = vmatpush1.msra.mxu0 0.0
    %211 = vmatprep.subr.mxu0 0.0
    %212 = vmatpush1.msra.mxu0 0.0
    %213 = vmatprep.mubr.f32.mxu0 0.0
    %214 = vmatmul.mubr.f32.gmra.mrb[0].mxu0 %v144
    %v215 = vpop.f32.mrb[0].mxu0
    %v216 = vadd.f32 %v139, %v215
    %v217 = vpop.f32.mrb[0].mxu0
    %218 = vdwg.mxu0
    %v219 = vld [vmem:[%s4] sm:$0x1]
    %v221 = vlaneseq
    %v222 = vshrl.u32 %v221, 7
    %v223 = vsub.s32 0, %v222
    %v224 = vrot.slane %v219, %v223
    %v226 = vadd.f32 %v216, %v224
    %v227 = vmax.f32 %v226, 0.0
    %v228 = vld [vmem:[#allocation5] sm:$0xff]
    %v229 = vld [vmem:[#allocation5 + $0x8] sm:$0xff]
    %v230 = vld [vmem:[#allocation5 + $0x10] sm:$0xff]
    %v231 = vld [vmem:[#allocation5 + $0x18] sm:$0xff]
    %v232 = vld [vmem:[#allocation5 + $0x20] sm:$0xff]
    %v233 = vld [vmem:[#allocation5 + $0x28] sm:$0xff]
    %v234 = vld [vmem:[#allocation5 + $0x30] sm:$0xff]
    %v235 = vld [vmem:[#allocation5 + $0x38] sm:$0xff]
    %v236 = vld [vmem:[#allocation5 + $0x40] sm:$0xff]
    %v237 = vld [vmem:[#allocation5 + $0x48] sm:$0xff]
    %v238 = vld [vmem:[#allocation5 + $0x50] sm:$0xff]
    %v239 = vld [vmem:[#allocation5 + $0x58] sm:$0xff]
    %v240 = vld [vmem:[#allocation5 + $0x60] sm:$0xff]
    %v241 = vld [vmem:[#allocation5 + $0x68] sm:$0xff]
    %v242 = vld [vmem:[#allocation5 + $0x70] sm:$0xff]
    %v243 = vld [vmem:[#allocation5 + $0x78] sm:$0xff]
    %v244 = vld [vmem:[%s6] sm:$0x1]
    %v246 = vlaneseq
    %v247 = vshrl.u32 %v246, 7
    %v248 = vsub.s32 0, %v247
    %v249 = vrot.slane %v244, %v248
    %251 = vmatprep.subr.mxu0 0.0
    %252 = vmatpush1.msra.mxu0 %v228
    %253 = vmatprep.subr.mxu0 0.0
    %254 = vmatpush1.msra.mxu0 %v229
    %255 = vmatprep.subr.mxu0 0.0
    %256 = vmatpush1.msra.mxu0 %v230
    %257 = vmatprep.subr.mxu0 0.0
    %258 = vmatpush1.msra.mxu0 %v231
    %259 = vmatprep.subr.mxu0 0.0
    %260 = vmatpush1.msra.mxu0 %v232
    %261 = vmatprep.subr.mxu0 0.0
    %262 = vmatpush1.msra.mxu0 %v233
    %263 = vmatprep.subr.mxu0 0.0
    %264 = vmatpush1.msra.mxu0 %v234
    %265 = vmatprep.subr.mxu0 0.0
    %266 = vmatpush1.msra.mxu0 %v235
    %267 = vmatprep.subr.mxu0 0.0
    %268 = vmatpush1.msra.mxu0 %v236
    %269 = vmatprep.subr.mxu0 0.0
    %270 = vmatpush1.msra.mxu0 %v237
    %271 = vmatprep.subr.mxu0 0.0
    %272 = vmatpush1.msra.mxu0 %v238
    %273 = vmatprep.subr.mxu0 0.0
    %274 = vmatpush1.msra.mxu0 %v239
    %275 = vmatprep.subr.mxu0 0.0
    %276 = vmatpush1.msra.mxu0 %v240
    %277 = vmatprep.subr.mxu0 0.0
    %278 = vmatpush1.msra.mxu0 %v241
    %279 = vmatprep.subr.mxu0 0.0
    %280 = vmatpush1.msra.mxu0 %v242
    %281 = vmatprep.subr.mxu0 0.0
    %282 = vmatpush1.msra.mxu0 %v243
    %283 = vmatprep.subr.mxu0 0.0
    %284 = vmatpush1.msra.mxu0 0.0
    %285 = vmatprep.subr.mxu0 0.0
    %286 = vmatpush1.msra.mxu0 0.0
    %287 = vmatprep.subr.mxu0 0.0
    %288 = vmatpush1.msra.mxu0 0.0
    %289 = vmatprep.subr.mxu0 0.0
    %290 = vmatpush1.msra.mxu0 0.0
    %291 = vmatprep.subr.mxu0 0.0
    %292 = vmatpush1.msra.mxu0 0.0
    %293 = vmatprep.subr.mxu0 0.0
    %294 = vmatpush1.msra.mxu0 0.0
    %295 = vmatprep.subr.mxu0 0.0
    %296 = vmatpush1.msra.mxu0 0.0
    %297 = vmatprep.subr.mxu0 0.0
    %298 = vmatpush1.msra.mxu0 0.0
    %299 = vmatprep.subr.mxu0 0.0
    %300 = vmatpush1.msra.mxu0 0.0
    %301 = vmatprep.subr.mxu0 0.0
    %302 = vmatpush1.msra.mxu0 0.0
    %303 = vmatprep.subr.mxu0 0.0
    %304 = vmatpush1.msra.mxu0 0.0
    %305 = vmatprep.subr.mxu0 0.0
    %306 = vmatpush1.msra.mxu0 0.0
    %307 = vmatprep.subr.mxu0 0.0
    %308 = vmatpush1.msra.mxu0 0.0
    %309 = vmatprep.subr.mxu0 0.0
    %310 = vmatpush1.msra.mxu0 0.0
    %311 = vmatprep.subr.mxu0 0.0
    %312 = vmatpush1.msra.mxu0 0.0
    %313 = vmatprep.subr.mxu0 0.0
    %314 = vmatpush1.msra.mxu0 0.0
    %315 = vmatprep.mubr.f32.mxu0 0.0
    %316 = vmatmul.mubr.f32.gmra.mrb[0].mxu0 %v227
    %v317 = vpop.f32.mrb[0].mxu0
    %v318 = vadd.f32 %v249, %v317
    %v319 = vpop.f32.mrb[0].mxu0
    %320 = vdwg.mxu0
    %v321 = vmax.f32 %v318, 0.0
    %v322 = vld [vmem:[%s7] sm:$0x3]
    %v323 = vld [vmem:[%s8] sm:$0x3]
    %325 = vset.pattern.permute.xlu0 0
    %326 = vperm.xlu0 %325, %v323
    %v327 = vpop.permute.xlu0 %326
    %329 = vmatprep.subr.mxu0 0.0
    %330 = vmatpush1.xpose.msra.mxu0 %v321
    %331 = vmatprep.subr.mxu0 0.0
    %332 = vmatpush1.xpose.msra.mxu0 0.0
    %333 = vmatprep.subr.mxu0 0.0
    %334 = vmatpush1.xpose.msra.mxu0 0.0
    %335 = vmatprep.subr.mxu0 0.0
    %336 = vmatpush1.xpose.msra.mxu0 0.0
    %337 = vmatprep.subr.mxu0 0.0
    %338 = vmatpush1.xpose.msra.mxu0 0.0
    %339 = vmatprep.subr.mxu0 0.0
    %340 = vmatpush1.xpose.msra.mxu0 0.0
    %341 = vmatprep.subr.mxu0 0.0
    %342 = vmatpush1.xpose.msra.mxu0 0.0
    %343 = vmatprep.subr.mxu0 0.0
    %344 = vmatpush1.xpose.msra.mxu0 0.0
    %345 = vmatprep.subr.mxu0 0.0
    %346 = vmatpush1.xpose.msra.mxu0 0.0
    %347 = vmatprep.subr.mxu0 0.0
    %348 = vmatpush1.xpose.msra.mxu0 0.0
    %349 = vmatprep.subr.mxu0 0.0
    %350 = vmatpush1.xpose.msra.mxu0 0.0
    %351 = vmatprep.subr.mxu0 0.0
    %352 = vmatpush1.xpose.msra.mxu0 0.0
    %353 = vmatprep.subr.mxu0 0.0
    %354 = vmatpush1.xpose.msra.mxu0 0.0
    %355 = vmatprep.subr.mxu0 0.0
    %356 = vmatpush1.xpose.msra.mxu0 0.0
    %357 = vmatprep.subr.mxu0 0.0
    %358 = vmatpush1.xpose.msra.mxu0 0.0
    %359 = vmatprep.subr.mxu0 0.0
    %360 = vmatpush1.xpose.msra.mxu0 0.0
    %361 = vmatprep.subr.mxu0 0.0
    %362 = vmatpush1.xpose.msra.mxu0 0.0
    %363 = vmatprep.subr.mxu0 0.0
    %364 = vmatpush1.xpose.msra.mxu0 0.0
    %365 = vmatprep.subr.mxu0 0.0
    %366 = vmatpush1.xpose.msra.mxu0 0.0
    %367 = vmatprep.subr.mxu0 0.0
    %368 = vmatpush1.xpose.msra.mxu0 0.0
    %369 = vmatprep.subr.mxu0 0.0
    %370 = vmatpush1.xpose.msra.mxu0 0.0
    %371 = vmatprep.subr.mxu0 0.0
    %372 = vmatpush1.xpose.msra.mxu0 0.0
    %373 = vmatprep.subr.mxu0 0.0
    %374 = vmatpush1.xpose.msra.mxu0 0.0
    %375 = vmatprep.subr.mxu0 0.0
    %376 = vmatpush1.xpose.msra.mxu0 0.0
    %377 = vmatprep.subr.mxu0 0.0
    %378 = vmatpush1.xpose.msra.mxu0 0.0
    %379 = vmatprep.subr.mxu0 0.0
    %380 = vmatpush1.xpose.msra.mxu0 0.0
    %381 = vmatprep.subr.mxu0 0.0
    %382 = vmatpush1.xpose.msra.mxu0 0.0
    %383 = vmatprep.subr.mxu0 0.0
    %384 = vmatpush1.xpose.msra.mxu0 0.0
    %385 = vmatprep.subr.mxu0 0.0
    %386 = vmatpush1.xpose.msra.mxu0 0.0
    %387 = vmatprep.subr.mxu0 0.0
    %388 = vmatpush1.xpose.msra.mxu0 0.0
    %389 = vmatprep.subr.mxu0 0.0
    %390 = vmatpush1.xpose.msra.mxu0 0.0
    %391 = vmatprep.subr.mxu0 0.0
    %392 = vmatpush1.xpose.msra.mxu0 0.0
    %393 = vmatprep.mubr.f32.mxu0 0.0
    %394 = vmatmul.mubr.f32.gmra.mrb[0].mxu0 %v322
    %v395 = vpop.f32.mrb[0].mxu0
    %v396 = vadd.f32 %v327, %v395
    %v397 = vpop.f32.mrb[0].mxu0
    %398 = vdwg.mxu0
    %vm399 = vcmask 58368
    %400 = vst.msk [vmem:[#allocation7] sm:$0x3] %vm399, %v396
    // Predicated region
    $region46: #{tpu_custom_call.1} parent=1 // pred_check
      _
    $region47: #{tpu_custom_call.1} parent=1 // pred_check_branch
      %402 = sbr.rel (0) target = $region49
    $region48: #{tpu_custom_call.1} parent=1 // pred_region
      %s404 = ssub.s32 32, 32
      %405 = vsyncadd [#allocation4], %s404
      %s407 = sshll.u32 [#allocation7], 4
      %s408 = int_to_ptr.vmem [resolvable:$true] %s407
      %410 = dma.vmem_to_hbm [thread:$0]  %s408, 32, %s9, [#allocation4]
    $region49: #{tpu_custom_call.1} parent=1 // pred_fallthru
      _
    // Predicated region
    $region50: #{tpu_custom_call.1} parent=1 // pred_check
      _
    $region51: #{tpu_custom_call.1} parent=1 // pred_check_branch
      %412 = sbr.rel (0) target = $region53
    $region52: #{tpu_custom_call.1} parent=1 // pred_region
      %413 = dma.done [#allocation4], 32
    $region53: #{tpu_custom_call.1} parent=1 // pred_fallthru
      _
    %414 = vsyncpa [#allocation3], 1
    %415 = vsyncpa [#allocation6], 1
    %416 = vsyncpa [#allocation4], 1

</llo_original>
